<compile_context>
chip_gen: v6e
topology: v6e:2x2x1
jax: 0.10.0
libtpu: 0.0.40
codegen_flags: <defaults>
</compile_context>

<pallas_src>
import functools

import jax
import jax.numpy as jnp
from jax import lax
from jax.experimental import pallas as pl
from jax.experimental.pallas import tpu as pltpu


def _choose_hw_tile(hw, cap=2048):
    """Largest multiple of 128 that divides hw and is <= cap; else full hw."""
    if hw % 128 != 0:
        return hw          # full-extent block is always legal
    best = 128
    t = 128
    while t <= min(hw, cap):
        if hw % t == 0:
            best = t
        t += 128
    return best


def _vmem_limit_bytes(c, thw, itemsize):
    feat_bufs = 3 * c * thw * itemsize           # double-buffered tile + slack
    fixed = 8 * c * c * 4 + (2 << 20)            # target + gram scratch + misc
    return int(min(max(feat_bufs + fixed, 16 << 20), 64 << 20))


# ----------------------------------------------------------------------------
# Kernel 1: gram matrix only (used for the "target" in __init__)
# ----------------------------------------------------------------------------
def _gram_kernel(feat_ref, g_ref, gram_acc, *, inv_denom):
    k = pl.program_id(1)

    @pl.when(k == 0)
    def _():
        gram_acc[...] = jnp.zeros_like(gram_acc)

    f = feat_ref[0]                               # (C, tHW), native dtype
    # Contract last dims of both operands -> (C, C) on the MXU, no transpose.
    gram_acc[...] += lax.dot_general(
        f, f, (((1,), (1,)), ((), ())), preferred_element_type=jnp.float32)

    @pl.when(k == pl.num_programs(1) - 1)
    def _():
        g_ref[0] = (gram_acc[...] * inv_denom).astype(g_ref.dtype)


def gram_matrix_pallas(x_nchw, tile_hw=None):
    n, c, h, w = x_nchw.shape
    hw = h * w
    feats = x_nchw.reshape(n, c, hw)              # keep native dtype (no upcast)
    thw = tile_hw if tile_hw is not None else _choose_hw_tile(hw)
    assert hw % thw == 0 and (thw % 128 == 0 or thw == hw)
    n_k = hw // thw
    kernel = functools.partial(_gram_kernel, inv_denom=1.0 / float(c * h * w))
    return pl.pallas_call(
        kernel,
        out_shape=jax.ShapeDtypeStruct((n, c, c), jnp.float32),
        grid_spec=pltpu.PrefetchScalarGridSpec(
            num_scalar_prefetch=0,
            grid=(n, n_k),
            in_specs=[pl.BlockSpec((1, c, thw), lambda b, k: (b, 0, k))],
            out_specs=pl.BlockSpec((1, c, c), lambda b, k: (b, 0, 0)),
            scratch_shapes=[pltpu.VMEM((c, c), jnp.float32)],
        ),
        compiler_params=pltpu.CompilerParams(
            dimension_semantics=("parallel", "arbitrary"),
            vmem_limit_bytes=_vmem_limit_bytes(c, thw, feats.dtype.itemsize),
        ),
    )(feats)


# ----------------------------------------------------------------------------
# Kernel 2: fused gram + MSE-vs-target (forward hot path).
# Emits per-batch loss partials only; batch axis is "parallel".
# ----------------------------------------------------------------------------
def _style_loss_kernel(feat_ref, tgt_ref, loss_ref, gram_acc,
                       *, inv_denom, inv_n_total):
    k = pl.program_id(1)

    @pl.when(k == 0)
    def _():
        gram_acc[...] = jnp.zeros_like(gram_acc)

    f = feat_ref[0]                               # (C, tHW), native dtype
    gram_acc[...] += lax.dot_general(
        f, f, (((1,), (1,)), ((), ())), preferred_element_type=jnp.float32)

    # Only touch the target / do the VPU+XLU reduction at the final K step,
    # keeping the inner K loop MXU-only.
    @pl.when(k == pl.num_programs(1) - 1)
    def _():
        g = gram_acc[...] * inv_denom
        diff = g - tgt_ref[...].astype(jnp.float32)
        loss_ref[...] = (jnp.sum(diff * diff) * inv_n_total).reshape(1, 1, 1)


def style_loss_forward(x_nchw, target_gram_cc, tile_hw=None):
    """Returns (input_passthrough, loss_scalar)."""
    n, c, h, w = x_nchw.shape
    hw = h * w
    feats = x_nchw.reshape(n, c, hw)              # keep native dtype (no upcast)
    thw = tile_hw if tile_hw is not None else _choose_hw_tile(hw)
    assert hw % thw == 0 and (thw % 128 == 0 or thw == hw)
    n_k = hw // thw
    kernel = functools.partial(
        _style_loss_kernel,
        inv_denom=1.0 / float(c * h * w),
        inv_n_total=1.0 / float(n * c * c),
    )
    partials = pl.pallas_call(
        kernel,
        out_shape=jax.ShapeDtypeStruct((n, 1, 1), jnp.float32),
        grid_spec=pltpu.PrefetchScalarGridSpec(
            num_scalar_prefetch=0,
            grid=(n, n_k),
            in_specs=[
                pl.BlockSpec((1, c, thw), lambda b, k: (b, 0, k)),
                pl.BlockSpec((c, c), lambda b, k: (0, 0)),
            ],
            out_specs=pl.BlockSpec((1, 1, 1), lambda b, k: (b, 0, 0)),
            scratch_shapes=[pltpu.VMEM((c, c), jnp.float32)],
        ),
        compiler_params=pltpu.CompilerParams(
            dimension_semantics=("parallel", "arbitrary"),
            vmem_limit_bytes=_vmem_limit_bytes(c, thw, feats.dtype.itemsize),
        ),
    )(feats, target_gram_cc.astype(jnp.float32))
    # Sum of per-batch partials (already scaled by 1/(N*C*C)) = mean MSE.
    loss = jnp.sum(partials)
    return x_nchw, loss


class StyleLossPallas:
    """JAX/Pallas port of the PyTorch StyleLoss module (forward pass)."""

    def __init__(self, target_feature_nchw):
        # gram_matrix(target_feature).detach(); keep (C, C) of batch element 0
        # (PyTorch .expand(N, -1, -1) requires a broadcastable target batch).
        self.target = gram_matrix_pallas(target_feature_nchw)[0]   # (C, C) f32
        self.loss = None

    def __call__(self, x_nchw, tile_hw=None):
        out, loss = style_loss_forward(x_nchw, self.target, tile_hw=tile_hw)
        self.loss = loss
        return out


if __name__ == "__main__":
    key = jax.random.PRNGKey(0)
    k1, k2 = jax.random.split(key)

    N, C, H, W = 2, 4, 16, 16
    target_feature = jax.random.normal(k1, (1, C, H, W), dtype=jnp.float32)
    x = jax.random.normal(k2, (N, C, H, W), dtype=jnp.float32)

    module = StyleLossPallas(target_feature)
    out = jax.block_until_ready(module(x))
    loss = jax.block_until_ready(module.loss)

    # Also exercise the multi-step K-tiled (HW reduction) path explicitly.
    _, loss_tiled = style_loss_forward(x, module.target, tile_hw=128)
    loss_tiled = jax.block_until_ready(loss_tiled)

    # Pure-JAX reference check
    def gram_ref(v):
        n, c, h, w = v.shape
        f = v.reshape(n, c, h * w).astype(jnp.float32)
        return jnp.einsum("ncp,nkp->nck", f, f) / (c * h * w)

    g_tgt_ref = gram_ref(target_feature)[0]
    loss_ref = jnp.mean((gram_ref(x) - g_tgt_ref[None]) ** 2)

    assert jnp.allclose(out, x), "forward must return input unchanged"
    assert jnp.allclose(module.target, g_tgt_ref, rtol=1e-5, atol=1e-6)
    assert jnp.allclose(loss, loss_ref, rtol=1e-4, atol=1e-6), (loss, loss_ref)
    assert jnp.allclose(loss_tiled, loss_ref, rtol=1e-4, atol=1e-6), (
        loss_tiled, loss_ref)

    print("KERNEL_OK")
</pallas_src>

<mosaic_0001>
module attributes {stable_mosaic.version = 11 : i64} {
  func.func @_gram_kernel(%arg0: i32, %arg1: i32, %arg2: memref<1x4x256xf32, #tpu.memory_space<vmem>>, %arg3: memref<1x4x4xf32, #tpu.memory_space<vmem>>, %arg4: memref<4x4xf32, #tpu.memory_space<vmem>>) attributes {dimension_semantics = [#tpu.dimension_semantics<parallel>, #tpu.dimension_semantics<arbitrary>], iteration_bounds = array<i64: 1, 1>, scalar_prefetch = 0 : i64, scratch_operands = 1 : i64, tpu.core_type = #tpu.core_type<tc>, window_params = [{transform_indices = @transform_0, window_bounds = array<i64: 1, 4, 256>}, {transform_indices = @transform_1, window_bounds = array<i64: 1, 4, 4>}]} {
    %c0_i32 = arith.constant 0 : i32
    %0 = arith.cmpi eq, %arg1, %c0_i32 : i32
    %1 = arith.extui %0 : i1 to i32
    %c0_i32_0 = arith.constant 0 : i32
    %2 = arith.cmpi ne, %1, %c0_i32_0 : i32
    scf.if %2 {
      %cst_9 = arith.constant 0.000000e+00 : f32
      %12 = vector.broadcast %cst_9 : f32 to vector<4x4xf32>
      %c0_10 = arith.constant 0 : index
      %c0_11 = arith.constant 0 : index
      %13 = vector.load %arg4[%c0_10, %c0_11] : memref<4x4xf32, #tpu.memory_space<vmem>>, vector<4x4xf32>
      tpu.vector_store %arg4[%c0_10, %c0_11], %12 {strides = array<i32>} : memref<4x4xf32, #tpu.memory_space<vmem>>, vector<4x4xf32>,
    } else {
    }
    %c0 = arith.constant 0 : index
    %c0_1 = arith.constant 0 : index
    %c0_2 = arith.constant 0 : index
    %3 = vector.load %arg2[%c0, %c0_1, %c0_2] : memref<1x4x256xf32, #tpu.memory_space<vmem>>, vector<1x4x256xf32>
    %4 = vector.shape_cast %3 : vector<1x4x256xf32> to vector<4x256xf32>
    %c0_3 = arith.constant 0 : index
    %c0_4 = arith.constant 0 : index
    %5 = vector.load %arg4[%c0_3, %c0_4] : memref<4x4xf32, #tpu.memory_space<vmem>>, vector<4x4xf32>
    %cst = arith.constant dense<0.000000e+00> : vector<4x4xf32>
    %6 = tpu.matmul %4, %4, %cst {dimension_numbers = #tpu.dot_dimension_numbers<[1], [1], [0], [0], [0, 0, 1, 0], [], []>} : vector<4x256xf32>, vector<4x256xf32>, vector<4x4xf32> -> vector<4x4xf32>
    %7 = arith.addf %5, %6 : vector<4x4xf32>
    %c0_5 = arith.constant 0 : index
    %c0_6 = arith.constant 0 : index
    %8 = vector.load %arg4[%c0_5, %c0_6] : memref<4x4xf32, #tpu.memory_space<vmem>>, vector<4x4xf32>
    tpu.vector_store %arg4[%c0_5, %c0_6], %7 {strides = array<i32>} : memref<4x4xf32, #tpu.memory_space<vmem>>, vector<4x4xf32>,
    %c0_i32_7 = arith.constant 0 : i32
    %9 = arith.cmpi eq, %arg1, %c0_i32_7 : i32
    %10 = arith.extui %9 : i1 to i32
    %c0_i32_8 = arith.constant 0 : i32
    %11 = arith.cmpi ne, %10, %c0_i32_8 : i32
    scf.if %11 {
      %c0_9 = arith.constant 0 : index
      %c0_10 = arith.constant 0 : index
      %12 = vector.load %arg4[%c0_9, %c0_10] : memref<4x4xf32, #tpu.memory_space<vmem>>, vector<4x4xf32>
      %cst_11 = arith.constant 9.765625E-4 : f32
      %13 = vector.broadcast %cst_11 : f32 to vector<4x4xf32>
      %14 = arith.mulf %12, %13 : vector<4x4xf32>
      %c0_12 = arith.constant 0 : index
      %c0_13 = arith.constant 0 : index
      %c0_14 = arith.constant 0 : index
      %15 = vector.load %arg3[%c0_12, %c0_13, %c0_14] : memref<1x4x4xf32, #tpu.memory_space<vmem>>, vector<1x4x4xf32>
      %16 = vector.shape_cast %15 : vector<1x4x4xf32> to vector<4x4xf32>
      %17 = vector.shape_cast %14 : vector<4x4xf32> to vector<1x4x4xf32>
      tpu.vector_store %arg3[%c0_12, %c0_13, %c0_14], %17 {strides = array<i32>} : memref<1x4x4xf32, #tpu.memory_space<vmem>>, vector<1x4x4xf32>,
    } else {
    }
    return
  }
  func.func @transform_0(%arg0: i32, %arg1: i32) -> (i32, i32, i32) {
    %c0_i32 = arith.constant 0 : i32
    %c0_i32_0 = arith.constant 0 : i32
    return %arg0, %c0_i32, %arg1 : i32, i32, i32
  }
  func.func @transform_1(%arg0: i32, %arg1: i32) -> (i32, i32, i32) {
    %c0_i32 = arith.constant 0 : i32
    %c0_i32_0 = arith.constant 0 : i32
    %c0_i32_1 = arith.constant 0 : i32
    return %arg0, %c0_i32, %c0_i32_0 : i32, i32, i32
  }
}

</mosaic_0001>

<llo_original>
// kernel: tpu_custom_call.1
$region0: #{tpu_custom_call.1}
  #allocation0 [shape = 'u32[]', space=smem, size = 0x4, offset = 0x4, fixed_abs, tag = 'smem constant byte address 0x4 - core index']
  #allocation1 [shape = 'u32[144,128]{1,0:T(1,128)}', space=vmem, size = 0x12000, scoped, tag = 'internal scratch']
  #allocation2 [shape = 'f32[4,4]{1,0:T(4,128)}', space=vmem, size = 0x800, scoped, tag = 'scratch operand']
  %s0 = inlined_call_operand.hbm [shape: f32[1,4,256], index: 0, kind: input, shape index: {}]
  %s1 = inlined_call_operand.hbm [shape: f32[1,4,4], index: 1, kind: output, shape index: {}]
  %s2 = sld [smem:[#allocation0]]
  $region26: #{tpu_custom_call.1} parent=0
    _
  %s4 = ssub.s32 1, %s2
  %s5 = scalar_select 0, %s4, %s2
  $region1: #{tpu_custom_call.1} parent=0
    #allocation3 [shape = 'u8[4096]{0}', space=vmem, size = 0x1000, scoped, tag = 'input window, operand 0, single buffered']
    #allocation4 [shape = 's32[1]{0}', space=sflag, size = 0x4, scoped, tag = 'scoped memory for tpu_custom_call.1']
    #allocation5 [shape = 's32[1]{0}', space=sflag, size = 0x4, scoped, tag = 'scoped memory for tpu_custom_call.1']
    #allocation6 [shape = 'u8[2048]{0}', space=vmem, size = 0x800, scoped, tag = 'output window, operand 0, single buffered']
    %6 = vsyncpa [#allocation4], 0
    %7 = vsyncpa [#allocation5], 0
    // Predicated region
    $region2: #{tpu_custom_call.1} parent=1 // pred_check
      _
    $region3: #{tpu_custom_call.1} parent=1 // pred_check_branch
      %9 = sbr.rel (0) target = $region5
    $region4: #{tpu_custom_call.1} parent=1 // pred_region
      %s11 = ssub.s32 128, 128
      %12 = vsyncadd [#allocation4], %s11
      %s14 = sshll.u32 [#allocation3], 4
      %s15 = int_to_ptr.vmem [resolvable:$true] %s14
      %17 = dma.hbm_to_vmem [thread:$0]  %s0, 128, %s15, [#allocation4]
    $region5: #{tpu_custom_call.1} parent=1 // pred_fallthru
      _
    // Predicated region
    $region6: #{tpu_custom_call.1} parent=1 // pred_check
      _
    $region7: #{tpu_custom_call.1} parent=1 // pred_check_branch
      %19 = sbr.rel (0) target = $region9
    $region8: #{tpu_custom_call.1} parent=1 // pred_region
      %20 = dma.done [#allocation4], 128
    $region9: #{tpu_custom_call.1} parent=1 // pred_fallthru
      _
    %p21 = scmp.eq.s32.totalorder 0, 0
    // Predicated region
    $region10: #{tpu_custom_call.1} parent=1 // pred_check
      %p22 = pneg %p21
    $region11: #{tpu_custom_call.1} parent=1 // pred_check_branch
      %24 = sbr.rel (%p22) target = $region13
    $region12: #{tpu_custom_call.1} parent=1 // pred_region
      %vm25 = vcmask 27648
      %26 = vst.msk [vmem:[#allocation2] sm:$0xf] %vm25, 0.0
    $region13: #{tpu_custom_call.1} parent=1 // pred_fallthru
      _
    %v27 = vld [vmem:[#allocation3] sm:$0xff]
    %v28 = vld [vmem:[#allocation2] sm:$0xf]
    %v30 = vcombine.high %v27, %v27
    %32 = vmatprep.subr.mxu0 0.0
    %33 = vmatpush1.xpose.msra.mxu0 0.0
    %34 = vmatprep.subr.mxu0 0.0
    %35 = vmatpush1.xpose.msra.mxu0 0.0
    %36 = vmatprep.subr.mxu0 0.0
    %37 = vmatpush1.xpose.msra.mxu0 0.0
    %38 = vmatprep.subr.mxu0 0.0
    %39 = vmatpush1.xpose.msra.mxu0 0.0
    %40 = vmatprep.subr.mxu0 0.0
    %41 = vmatpush1.xpose.msra.mxu0 0.0
    %42 = vmatprep.subr.mxu0 0.0
    %43 = vmatpush1.xpose.msra.mxu0 0.0
    %44 = vmatprep.subr.mxu0 0.0
    %45 = vmatpush1.xpose.msra.mxu0 0.0
    %46 = vmatprep.subr.mxu0 0.0
    %47 = vmatpush1.xpose.msra.mxu0 0.0
    %48 = vmatprep.subr.mxu0 0.0
    %49 = vmatpush1.xpose.msra.mxu0 0.0
    %50 = vmatprep.subr.mxu0 0.0
    %51 = vmatpush1.xpose.msra.mxu0 0.0
    %52 = vmatprep.subr.mxu0 0.0
    %53 = vmatpush1.xpose.msra.mxu0 0.0
    %54 = vmatprep.subr.mxu0 0.0
    %55 = vmatpush1.xpose.msra.mxu0 0.0
    %56 = vmatprep.subr.mxu0 0.0
    %57 = vmatpush1.xpose.msra.mxu0 0.0
    %58 = vmatprep.subr.mxu0 0.0
    %59 = vmatpush1.xpose.msra.mxu0 0.0
    %60 = vmatprep.subr.mxu0 0.0
    %61 = vmatpush1.xpose.msra.mxu0 0.0
    %62 = vmatprep.subr.mxu0 %v30
    %63 = vmatpush1.xpose.msra.mxu0 %v27
    %64 = vmatprep.subr.mxu0 0.0
    %65 = vmatpush2.xpose.msra.mxu0 0.0
    %66 = vmatprep.subr.mxu0 0.0
    %67 = vmatpush2.xpose.msra.mxu0 0.0
    %68 = vmatprep.subr.mxu0 0.0
    %69 = vmatpush2.xpose.msra.mxu0 0.0
    %70 = vmatprep.subr.mxu0 0.0
    %71 = vmatpush2.xpose.msra.mxu0 0.0
    %72 = vmatprep.subr.mxu0 0.0
    %73 = vmatpush2.xpose.msra.mxu0 0.0
    %74 = vmatprep.subr.mxu0 0.0
    %75 = vmatpush2.xpose.msra.mxu0 0.0
    %76 = vmatprep.subr.mxu0 0.0
    %77 = vmatpush2.xpose.msra.mxu0 0.0
    %78 = vmatprep.subr.mxu0 0.0
    %79 = vmatpush2.xpose.msra.mxu0 0.0
    %80 = vmatprep.subr.mxu0 0.0
    %81 = vmatpush2.xpose.msra.mxu0 0.0
    %82 = vmatprep.subr.mxu0 0.0
    %83 = vmatpush2.xpose.msra.mxu0 0.0
    %84 = vmatprep.subr.mxu0 0.0
    %85 = vmatpush2.xpose.msra.mxu0 0.0
    %86 = vmatprep.subr.mxu0 0.0
    %87 = vmatpush2.xpose.msra.mxu0 0.0
    %88 = vmatprep.subr.mxu0 0.0
    %89 = vmatpush2.xpose.msra.mxu0 0.0
    %90 = vmatprep.subr.mxu0 0.0
    %91 = vmatpush2.xpose.msra.mxu0 0.0
    %92 = vmatprep.subr.mxu0 0.0
    %93 = vmatpush2.xpose.msra.mxu0 0.0
    %94 = vmatprep.subr.mxu0 0.0
    %95 = vmatpush2.xpose.msra.mxu0 0.0
    %96 = vmatprep.mubr.f32.mxu0 %v30
    %97 = vmatmul.mubr.f32.gmra.mxu0 %v27
    %v98 = vpop.f32.mrf.mxu0
    %v99 = vadd.f32 0.0, %v98
    %v100 = vpop.f32.mrf.mxu0
    %101 = vdwg.mxu0
    %v102 = vadd.f32 %v28, %v99
    %vm103 = vcmask 27648
    %104 = vst.msk [vmem:[#allocation2] sm:$0xf] %vm103, %v102
    // Predicated region
    $region14: #{tpu_custom_call.1} parent=1 // pred_check
      %p105 = pneg %p21
    $region15: #{tpu_custom_call.1} parent=1 // pred_check_branch
      %107 = sbr.rel (%p105) target = $region17
    $region16: #{tpu_custom_call.1} parent=1 // pred_region
      %v108 = vld [vmem:[#allocation2] sm:$0xf]
      %v109 = vmul.f32 %v108, 0.0009765625
      %110 = vst.msk [vmem:[#allocation6] sm:$0xf] %vm103, %v109
    $region17: #{tpu_custom_call.1} parent=1 // pred_fallthru
      _
    // Predicated region
    $region18: #{tpu_custom_call.1} parent=1 // pred_check
      _
    $region19: #{tpu_custom_call.1} parent=1 // pred_check_branch
      %112 = sbr.rel (0) target = $region21
    $region20: #{tpu_custom_call.1} parent=1 // pred_region
      %s114 = ssub.s32 64, 64
      %115 = vsyncadd [#allocation5], %s114
      %s117 = sshll.u32 [#allocation6], 4
      %s118 = int_to_ptr.vmem [resolvable:$true] %s117
      %120 = dma.vmem_to_hbm [thread:$0]  %s118, 64, %s1, [#allocation5]
    $region21: #{tpu_custom_call.1} parent=1 // pred_fallthru
      _
    // Predicated region
    $region22: #{tpu_custom_call.1} parent=1 // pred_check
      _
    $region23: #{tpu_custom_call.1} parent=1 // pred_check_branch
      %122 = sbr.rel (0) target = $region25
    $region24: #{tpu_custom_call.1} parent=1 // pred_region
      %123 = dma.done [#allocation5], 64
    $region25: #{tpu_custom_call.1} parent=1 // pred_fallthru
      _
    %124 = vsyncpa [#allocation4], 1
    %125 = vsyncpa [#allocation5], 1

</llo_original>
